<compile_context>
chip_gen: v7x
topology: tpu7x:2x2x1
jax: 0.10.0
libtpu: 0.0.40
codegen_flags: <defaults>
</compile_context>

<pallas_src>
import functools

import jax
import jax.numpy as jnp
from jax.experimental import pallas as pl
from jax.experimental.pallas import tpu as pltpu


def _round_up(x, m):
    return (x + m - 1) // m * m


def atom_mlp_kernel(z_ref, w1_ref, b1_ref, w2_ref, b2_ref, out_ref):
    """Fused 2-layer MLP: out = relu(z @ w1 + b1) @ w2 + b2.

    Both matmuls hit the MXU with f32 accumulation; bias-add and ReLU run on
    the VPU in f32.  Operands are either full-array VMEM blocks (small batch)
    or a batch tile of z/out with the (tiny) weights resident (tiled path).
    """
    z = z_ref[...].astype(jnp.float32)
    h = jnp.dot(z, w1_ref[...], preferred_element_type=jnp.float32) + b1_ref[...]
    h = jnp.maximum(h, 0.0)                                          # ReLU
    out = jnp.dot(h, w2_ref[...], preferred_element_type=jnp.float32) + b2_ref[...]
    # TODO(synk): if the consumer applies softmax/argmax/top-k over the logits,
    # fuse it here (VPU/EUP/XLU have large slack) and store the reduced result
    # instead of raw logits to shrink the dominant HBM writeback.
    out_ref[...] = out.astype(out_ref.dtype)


def prepare_atom_mlp_params(w1, b1, w2, b2):
    """One-time parameter prep (do this at model init, NOT per forward call).

    Pads w2/b2 columns to a multiple of 128 (padded columns produce exact
    zeros that are sliced off) and reshapes biases to (1, D) rows for a clean
    (sublane, lane) layout.
    """
    embd = w1.shape[0]
    out_dim = w2.shape[1]
    out_pad = _round_up(out_dim, 128)
    if out_pad != out_dim:
        w2 = jnp.pad(w2, ((0, 0), (0, out_pad - out_dim)))
        b2 = jnp.pad(b2, (0, out_pad - out_dim))
    return dict(
        w1=w1,                           # (E, E)
        b1=b1.reshape(1, embd),          # (1, E)
        w2=w2,                           # (E, out_pad)
        b2=b2.reshape(1, out_pad),       # (1, out_pad)
    )


@functools.partial(
    jax.jit,
    static_argnames=("vocab_size", "max_atoms", "block_n", "out_dtype",
                     "return_flat_padded"),
)
def atom_mlp(z, w1, b1, w2, b2, *, vocab_size, max_atoms, block_n=1024,
             out_dtype=None, return_flat_padded=False):
    """AtomMLP forward.  Parameters must come from `prepare_atom_mlp_params`.

    Returns (N, vocab_size, max_atoms) logits (module parity) or, with
    `return_flat_padded=True`, the raw lane-dense (N, out_pad) kernel output
    (columns >= vocab_size*max_atoms are exact zeros) with no extra HBM pass.
    """
    num_graphs, embd = z.shape
    out_dim = vocab_size * max_atoms
    out_pad = w2.shape[1]
    assert w1.shape == (embd, embd) and b1.shape == (1, embd)
    assert out_pad % 128 == 0 and out_pad >= out_dim and b2.shape == (1, out_pad)
    out_dtype = z.dtype if out_dtype is None else out_dtype
    out_itemsize = jnp.dtype(out_dtype).itemsize

    cost = pl.CostEstimate(
        flops=2 * num_graphs * embd * (embd + out_pad),
        transcendentals=0,
        bytes_accessed=(z.size * z.dtype.itemsize
                        + (w1.size + b1.size + w2.size + b2.size) * w1.dtype.itemsize
                        + num_graphs * out_pad * out_itemsize),
    )

    if num_graphs <= block_n:
        # Small batch: single invocation, no grid, no pipeline bookkeeping.
        # Every operand is one full-array VMEM block (~120 KB at default shapes).
        flat = pl.pallas_call(
            atom_mlp_kernel,
            out_shape=jax.ShapeDtypeStruct((num_graphs, out_pad), out_dtype),
            in_specs=[pl.BlockSpec(memory_space=pltpu.MemorySpace.VMEM)] * 5,
            out_specs=pl.BlockSpec(memory_space=pltpu.MemorySpace.VMEM),
            cost_estimate=cost,
        )(z, w1, b1, w2, b2)
    else:
        # Large batch: tile over rows, weights resident (index_map -> (0, 0)).
        # No explicit z padding: pl.cdiv grid + Pallas masks the ragged tail
        # tile's writeback.  "parallel" shards the row axis across TensorCores
        # on v7x; pick block_n so the grid count stays even there.
        grid_n = pl.cdiv(num_graphs, block_n)
        flat = pl.pallas_call(
            atom_mlp_kernel,
            out_shape=jax.ShapeDtypeStruct((num_graphs, out_pad), out_dtype),
            grid=(grid_n,),
            in_specs=[
                pl.BlockSpec((block_n, embd), lambda i: (i, 0)),
                pl.BlockSpec((embd, embd), lambda i: (0, 0)),
                pl.BlockSpec((1, embd), lambda i: (0, 0)),
                pl.BlockSpec((embd, out_pad), lambda i: (0, 0)),
                pl.BlockSpec((1, out_pad), lambda i: (0, 0)),
            ],
            out_specs=pl.BlockSpec((block_n, out_pad), lambda i: (i, 0)),
            compiler_params=pltpu.CompilerParams(
                dimension_semantics=("parallel",),
                vmem_limit_bytes=32 * 1024 * 1024,
            ),
            cost_estimate=cost,
        )(z, w1, b1, w2, b2)

    if return_flat_padded:
        return flat                                  # zero extra HBM passes
    # Module-parity view.  Single expression -> XLA fuses the column slice and
    # the (V, M) split into ONE copy (the 100-wide lane dim forces a relayout;
    # prefer return_flat_padded=True downstream when possible).
    return flat[:, :out_dim].reshape(num_graphs, vocab_size, max_atoms)


def reference_atom_mlp(z, w1, b1, w2, b2, vocab_size, max_atoms):
    h = jnp.maximum(z @ w1 + b1, 0.0)
    out = h @ w2 + b2
    return out.reshape(-1, vocab_size, max_atoms)


if __name__ == "__main__":
    # Module hyperparameters (defaults from AtomMLP.__init__).
    embd = 16
    vocab_size = 8
    max_atoms = 100
    out_dim = vocab_size * max_atoms

    key = jax.random.PRNGKey(0)
    k_z, k_w1, k_b1, k_w2, k_b2, k_z2 = jax.random.split(key, 6)

    # Deterministic synthetic parameters (pre-transposed nn.Linear weights).
    w1 = jax.random.normal(k_w1, (embd, embd), dtype=jnp.float32) * 0.1
    b1 = jax.random.normal(k_b1, (embd,), dtype=jnp.float32) * 0.1
    w2 = jax.random.normal(k_w2, (embd, out_dim), dtype=jnp.float32) * 0.1
    b2 = jax.random.normal(k_b2, (out_dim,), dtype=jnp.float32) * 0.1

    # One-time prep (padding / bias reshape) -- kept off the per-call hot path.
    params = prepare_atom_mlp_params(w1, b1, w2, b2)

    # --- Small-batch path: no grid, full-array VMEM blocks -------------------
    z_small = jax.random.normal(k_z, (4, embd), dtype=jnp.float32)
    boa_small = jax.block_until_ready(
        atom_mlp(z_small, **params, vocab_size=vocab_size, max_atoms=max_atoms))
    ref_small = reference_atom_mlp(z_small, w1, b1, w2, b2, vocab_size, max_atoms)
    assert boa_small.shape == (4, vocab_size, max_atoms), boa_small.shape
    assert jnp.allclose(boa_small, ref_small, atol=1e-4, rtol=1e-4), \
        "small-batch mismatch vs reference"

    # --- Batch-tiled path: grid over rows, ragged tail masked by Pallas ------
    z_big = jax.random.normal(k_z2, (300, embd), dtype=jnp.float32)
    boa_big = jax.block_until_ready(
        atom_mlp(z_big, **params, vocab_size=vocab_size, max_atoms=max_atoms,
                 block_n=128))
    ref_big = reference_atom_mlp(z_big, w1, b1, w2, b2, vocab_size, max_atoms)
    assert boa_big.shape == (300, vocab_size, max_atoms), boa_big.shape
    assert jnp.allclose(boa_big, ref_big, atol=1e-4, rtol=1e-4), \
        "large-batch mismatch vs reference"

    # --- Flat padded output (preferred downstream layout, no extra HBM pass) -
    flat = jax.block_until_ready(
        atom_mlp(z_small, **params, vocab_size=vocab_size, max_atoms=max_atoms,
                 return_flat_padded=True))
    assert flat.shape == (4, _round_up(out_dim, 128)), flat.shape
    assert jnp.allclose(flat[:, :out_dim].reshape(-1, vocab_size, max_atoms),
                        ref_small, atol=1e-4, rtol=1e-4)
    assert jnp.allclose(flat[:, out_dim:], 0.0)   # padded columns are exact zeros

    print("KERNEL_OK")
</pallas_src>

<mosaic_0001>
module attributes {stable_mosaic.version = 11 : i64} {
  func.func @atom_mlp_kernel(%arg0: memref<4x16xf32, #tpu.memory_space<vmem>>, %arg1: memref<16x16xf32, #tpu.memory_space<vmem>>, %arg2: memref<1x16xf32, #tpu.memory_space<vmem>>, %arg3: memref<16x896xf32, #tpu.memory_space<vmem>>, %arg4: memref<1x896xf32, #tpu.memory_space<vmem>>, %arg5: memref<4x896xf32, #tpu.memory_space<vmem>>) attributes {dimension_semantics = [], scalar_prefetch = 0 : i64, scratch_operands = 0 : i64, tpu.core_type = #tpu.core_type<tc>} {
    %c0 = arith.constant 0 : index
    %c0_0 = arith.constant 0 : index
    %0 = vector.load %arg0[%c0, %c0_0] : memref<4x16xf32, #tpu.memory_space<vmem>>, vector<4x16xf32>
    %c0_1 = arith.constant 0 : index
    %c0_2 = arith.constant 0 : index
    %1 = vector.load %arg1[%c0_1, %c0_2] : memref<16x16xf32, #tpu.memory_space<vmem>>, vector<16x16xf32>
    %cst = arith.constant dense<0.000000e+00> : vector<4x16xf32>
    %2 = tpu.matmul %0, %1, %cst {dimension_numbers = #tpu.dot_dimension_numbers<[1], [0], [0], [1], [0, 0, 1, 1], [], []>} : vector<4x16xf32>, vector<16x16xf32>, vector<4x16xf32> -> vector<4x16xf32>
    %c0_3 = arith.constant 0 : index
    %c0_4 = arith.constant 0 : index
    %3 = vector.load %arg2[%c0_3, %c0_4] : memref<1x16xf32, #tpu.memory_space<vmem>>, vector<1x16xf32>
    %4 = vector.broadcast %3 : vector<1x16xf32> to vector<4x16xf32>
    %5 = arith.addf %2, %4 : vector<4x16xf32>
    %cst_5 = arith.constant 0.000000e+00 : f32
    %6 = vector.broadcast %cst_5 : f32 to vector<4x16xf32>
    %7 = arith.maximumf %5, %6 : vector<4x16xf32>
    %c0_6 = arith.constant 0 : index
    %c0_7 = arith.constant 0 : index
    %8 = vector.load %arg3[%c0_6, %c0_7] : memref<16x896xf32, #tpu.memory_space<vmem>>, vector<16x896xf32>
    %cst_8 = arith.constant dense<0.000000e+00> : vector<4x896xf32>
    %9 = tpu.matmul %7, %8, %cst_8 {dimension_numbers = #tpu.dot_dimension_numbers<[1], [0], [0], [1], [0, 0, 1, 1], [], []>} : vector<4x16xf32>, vector<16x896xf32>, vector<4x896xf32> -> vector<4x896xf32>
    %c0_9 = arith.constant 0 : index
    %c0_10 = arith.constant 0 : index
    %10 = vector.load %arg4[%c0_9, %c0_10] : memref<1x896xf32, #tpu.memory_space<vmem>>, vector<1x896xf32>
    %11 = vector.broadcast %10 : vector<1x896xf32> to vector<4x896xf32>
    %12 = arith.addf %9, %11 : vector<4x896xf32>
    %c0_11 = arith.constant 0 : index
    %c0_12 = arith.constant 0 : index
    %13 = vector.load %arg5[%c0_11, %c0_12] : memref<4x896xf32, #tpu.memory_space<vmem>>, vector<4x896xf32>
    tpu.vector_store %arg5[%c0_11, %c0_12], %12 {strides = array<i32>} : memref<4x896xf32, #tpu.memory_space<vmem>>, vector<4x896xf32>,
    return
  }
}

</mosaic_0001>

<llo_original>
// kernel: atom_mlp.1
$region0: #{atom_mlp.1}
  #allocation0 [shape = 'u32[]', space=smem, size = 0x4, offset = 0x4, fixed_abs, tag = 'smem constant byte address 0x4 - core index']
  #allocation1 [shape = 'u32[144,128]{1,0:T(1,128)}', space=vmem, size = 0x12000, scoped, tag = 'internal scratch']
  %s0 = inlined_call_operand.hbm [shape: f32[4,16], index: 0, kind: input, shape index: {}]
  %s1 = inlined_call_operand.hbm [shape: f32[16,16], index: 1, kind: input, shape index: {}]
  %s2 = inlined_call_operand.hbm [shape: f32[1,16], index: 2, kind: input, shape index: {}]
  %s3 = inlined_call_operand.hbm [shape: f32[16,896], index: 3, kind: input, shape index: {}]
  %s4 = inlined_call_operand.vmem [shape: f32[1,896], index: 4, kind: input, shape index: {}]
  %s5 = inlined_call_operand.vmem [shape: f32[4,896], index: 5, kind: output, shape index: {}]
  %s6 = sld [smem:[#allocation0]]
  $region46: #{atom_mlp.1} parent=0
    _
  %s8 = ssub.s32 1, %s6
  %s9 = scalar_select 0, %s8, %s6
  $region1: #{atom_mlp.1} parent=0
    #allocation2 [shape = 'u8[2048]{0}', space=vmem, size = 0x800, scoped, tag = 'input window, operand 0, single buffered']
    #allocation3 [shape = 's32[1]{0}', space=sflag, size = 0x4, scoped, tag = 'scoped memory for atom_mlp.1']
    #allocation4 [shape = 'u8[8192]{0}', space=vmem, size = 0x2000, scoped, tag = 'input window, operand 1, single buffered']
    #allocation5 [shape = 's32[1]{0}', space=sflag, size = 0x4, scoped, tag = 'scoped memory for atom_mlp.1']
    #allocation6 [shape = 'u8[512]{0}', space=vmem, size = 0x400, scoped, tag = 'input window, operand 2, single buffered']
    #allocation7 [shape = 'u8[57344]{0}', space=vmem, size = 0xe000, scoped, tag = 'input window, operand 3, single buffered']
    #allocation8 [shape = 's32[1]{0}', space=sflag, size = 0x4, scoped, tag = 'scoped memory for atom_mlp.1']
    %10 = vsyncpa [#allocation3], 0
    %11 = vsyncpa [#allocation5], 0
    %12 = vsyncpa [#allocation8], 0
    // Predicated region
    $region2: #{atom_mlp.1} parent=1 // pred_check
      _
    $region3: #{atom_mlp.1} parent=1 // pred_check_branch
      %14 = sbr.rel (0) target = $region5
    $region4: #{atom_mlp.1} parent=1 // pred_region
      %s16 = ssub.s32 64, 64
      %17 = vsyncadd [#allocation3], %s16
      %s19 = sshll.u32 [#allocation2], 4
      %s20 = int_to_ptr.vmem [resolvable:$true] %s19
      %22 = dma.hbm_to_vmem [thread:$0]  %s0, 64, %s20, [#allocation3]
    $region5: #{atom_mlp.1} parent=1 // pred_fallthru
      _
    // Predicated region
    $region6: #{atom_mlp.1} parent=1 // pred_check
      _
    $region7: #{atom_mlp.1} parent=1 // pred_check_branch
      %24 = sbr.rel (0) target = $region9
    $region8: #{atom_mlp.1} parent=1 // pred_region
      %s26 = ssub.s32 256, 256
      %27 = vsyncadd [#allocation5], %s26
      %s28 = sshll.u32 [#allocation4], 4
      %s29 = int_to_ptr.vmem [resolvable:$true] %s28
      %34 = dma.hbm_to_vmem [thread:$0]  %s1, 256, %s29, [#allocation5], 128, 128, 8
    $region9: #{atom_mlp.1} parent=1 // pred_fallthru
      _
    // Predicated region
    $region10: #{atom_mlp.1} parent=1 // pred_check
      _
    $region11: #{atom_mlp.1} parent=1 // pred_check_branch
      %36 = sbr.rel (0) target = $region13
    $region12: #{atom_mlp.1} parent=1 // pred_region
      %s38 = ssub.s32 16, 16
      %39 = vsyncadd [#allocation5], %s38
      %s41 = sshll.u32 [#allocation6], 4
      %s42 = int_to_ptr.vmem [resolvable:$true] %s41
      %44 = dma.hbm_to_vmem [thread:$0]  %s2, 16, %s42, [#allocation5]
    $region13: #{atom_mlp.1} parent=1 // pred_fallthru
      _
    // Predicated region
    $region14: #{atom_mlp.1} parent=1 // pred_check
      _
    $region15: #{atom_mlp.1} parent=1 // pred_check_branch
      %46 = sbr.rel (0) target = $region17
    $region16: #{atom_mlp.1} parent=1 // pred_region
      %s48 = ssub.s32 1792, 1792
      %49 = vsyncadd [#allocation8], %s48
      %s50 = sshll.u32 [#allocation7], 4
      %s51 = int_to_ptr.vmem [resolvable:$true] %s50
      %56 = dma.hbm_to_vmem [thread:$0]  %s3, 1792, %s51, [#allocation8], 896, 896, 56
    $region17: #{atom_mlp.1} parent=1 // pred_fallthru
      _
    // Predicated region
    $region18: #{atom_mlp.1} parent=1 // pred_check
      _
    $region19: #{atom_mlp.1} parent=1 // pred_check_branch
      %58 = sbr.rel (0) target = $region21
    $region20: #{atom_mlp.1} parent=1 // pred_region
      _
    $region21: #{atom_mlp.1} parent=1 // pred_fallthru
      _
    // Predicated region
    $region22: #{atom_mlp.1} parent=1 // pred_check
      _
    $region23: #{atom_mlp.1} parent=1 // pred_check_branch
      %60 = sbr.rel (0) target = $region25
    $region24: #{atom_mlp.1} parent=1 // pred_region
      %61 = dma.done [#allocation3], 64
    $region25: #{atom_mlp.1} parent=1 // pred_fallthru
      _
    // Predicated region
    $region26: #{atom_mlp.1} parent=1 // pred_check
      _
    $region27: #{atom_mlp.1} parent=1 // pred_check_branch
      %63 = sbr.rel (0) target = $region29
    $region28: #{atom_mlp.1} parent=1 // pred_region
      %64 = dma.done [#allocation5], 256
    $region29: #{atom_mlp.1} parent=1 // pred_fallthru
      _
    // Predicated region
    $region30: #{atom_mlp.1} parent=1 // pred_check
      _
    $region31: #{atom_mlp.1} parent=1 // pred_check_branch
      %66 = sbr.rel (0) target = $region33
    $region32: #{atom_mlp.1} parent=1 // pred_region
      %67 = dma.done [#allocation5], 16
    $region33: #{atom_mlp.1} parent=1 // pred_fallthru
      _
    // Predicated region
    $region34: #{atom_mlp.1} parent=1 // pred_check
      _
    $region35: #{atom_mlp.1} parent=1 // pred_check_branch
      %69 = sbr.rel (0) target = $region37
    $region36: #{atom_mlp.1} parent=1 // pred_region
      %70 = dma.done [#allocation8], 1792
    $region37: #{atom_mlp.1} parent=1 // pred_fallthru
      _
    %v71 = vld [vmem:[#allocation2] sm:$0xf]
    %v72 = vld [vmem:[#allocation4] sm:$0xff]
    %v73 = vld [vmem:[#allocation4 + $0x8] sm:$0xff]
    %v74 = vld [vmem:[#allocation6] sm:$0x1]
    %v76 = vlaneseq
    %v77 = vshrl.u32 %v76, 7
    %v78 = vsub.s32 0, %v77
    %v79 = vrot.slane %v74, %v78
    %vm81 = vcmask 130048
    %v83 = vsel %vm81, %v71, 0
    %85 = vmatprep.subr.mxu0 0.0
    %86 = vmatpush1.msra.mxu0 %v72
    %87 = vmatprep.subr.mxu0 0.0
    %88 = vmatpush1.msra.mxu0 %v73
    %89 = vmatprep.subr.mxu0 0.0
    %90 = vmatpush1.msra.mxu0 0.0
    %91 = vmatprep.subr.mxu0 0.0
    %92 = vmatpush1.msra.mxu0 0.0
    %93 = vmatprep.subr.mxu0 0.0
    %94 = vmatpush1.msra.mxu0 0.0
    %95 = vmatprep.subr.mxu0 0.0
    %96 = vmatpush1.msra.mxu0 0.0
    %97 = vmatprep.subr.mxu0 0.0
    %98 = vmatpush1.msra.mxu0 0.0
    %99 = vmatprep.subr.mxu0 0.0
    %100 = vmatpush1.msra.mxu0 0.0
    %101 = vmatprep.subr.mxu0 0.0
    %102 = vmatpush1.msra.mxu0 0.0
    %103 = vmatprep.subr.mxu0 0.0
    %104 = vmatpush1.msra.mxu0 0.0
    %105 = vmatprep.subr.mxu0 0.0
    %106 = vmatpush1.msra.mxu0 0.0
    %107 = vmatprep.subr.mxu0 0.0
    %108 = vmatpush1.msra.mxu0 0.0
    %109 = vmatprep.subr.mxu0 0.0
    %110 = vmatpush1.msra.mxu0 0.0
    %111 = vmatprep.subr.mxu0 0.0
    %112 = vmatpush1.msra.mxu0 0.0
    %113 = vmatprep.subr.mxu0 0.0
    %114 = vmatpush1.msra.mxu0 0.0
    %115 = vmatprep.subr.mxu0 0.0
    %116 = vmatpush1.msra.mxu0 0.0
    %117 = vmatprep.subr.mxu0 0.0
    %118 = vmatpush1.msra.mxu0 0.0
    %119 = vmatprep.subr.mxu0 0.0
    %120 = vmatpush1.msra.mxu0 0.0
    %121 = vmatprep.subr.mxu0 0.0
    %122 = vmatpush1.msra.mxu0 0.0
    %123 = vmatprep.subr.mxu0 0.0
    %124 = vmatpush1.msra.mxu0 0.0
    %125 = vmatprep.subr.mxu0 0.0
    %126 = vmatpush1.msra.mxu0 0.0
    %127 = vmatprep.subr.mxu0 0.0
    %128 = vmatpush1.msra.mxu0 0.0
    %129 = vmatprep.subr.mxu0 0.0
    %130 = vmatpush1.msra.mxu0 0.0
    %131 = vmatprep.subr.mxu0 0.0
    %132 = vmatpush1.msra.mxu0 0.0
    %133 = vmatprep.subr.mxu0 0.0
    %134 = vmatpush1.msra.mxu0 0.0
    %135 = vmatprep.subr.mxu0 0.0
    %136 = vmatpush1.msra.mxu0 0.0
    %137 = vmatprep.subr.mxu0 0.0
    %138 = vmatpush1.msra.mxu0 0.0
    %139 = vmatprep.subr.mxu0 0.0
    %140 = vmatpush1.msra.mxu0 0.0
    %141 = vmatprep.subr.mxu0 0.0
    %142 = vmatpush1.msra.mxu0 0.0
    %143 = vmatprep.subr.mxu0 0.0
    %144 = vmatpush1.msra.mxu0 0.0
    %145 = vmatprep.subr.mxu0 0.0
    %146 = vmatpush1.msra.mxu0 0.0
    %147 = vmatprep.subr.mxu0 0.0
    %148 = vmatpush1.msra.mxu0 0.0
    %149 = vmatprep.mubr.f32.mxu0 0.0
    %150 = vmatmul.mubr.f32.gmra.mrb[0].mxu0 %v83
    %v151 = vpop.f32.mrb[0].mxu0
    %v152 = vadd.f32 %v79, %v151
    %v153 = vpop.f32.mrb[0].mxu0
    %154 = vdwg.mxu0
    %v155 = vmax.f32 %v152, 0.0
    %v156 = vld [vmem:[#allocation7] sm:$0xff]
    %v157 = vld [vmem:[#allocation7 + $0x8] sm:$0xff]
    %v158 = vld [vmem:[#allocation7 + $0x10] sm:$0xff]
    %v159 = vld [vmem:[#allocation7 + $0x18] sm:$0xff]
    %v160 = vld [vmem:[#allocation7 + $0x20] sm:$0xff]
    %v161 = vld [vmem:[#allocation7 + $0x28] sm:$0xff]
    %v162 = vld [vmem:[#allocation7 + $0x30] sm:$0xff]
    %v163 = vld [vmem:[#allocation7 + $0x38] sm:$0xff]
    %v164 = vld [vmem:[#allocation7 + $0x40] sm:$0xff]
    %v165 = vld [vmem:[#allocation7 + $0x48] sm:$0xff]
    %v166 = vld [vmem:[#allocation7 + $0x50] sm:$0xff]
    %v167 = vld [vmem:[#allocation7 + $0x58] sm:$0xff]
    %v168 = vld [vmem:[#allocation7 + $0x60] sm:$0xff]
    %v169 = vld [vmem:[#allocation7 + $0x68] sm:$0xff]
    %v170 = vld [vmem:[%s4] sm:$0xff]
    %v172 = vlaneseq
    %v173 = vshrl.u32 %v172, 7
    %v174 = vsub.s32 0, %v173
    %v175 = vrot.slane %v170, %v174
    %v176 = vlaneseq
    %v177 = vshrl.u32 %v176, 7
    %v178 = vsub.s32 1, %v177
    %v179 = vrot.slane %v170, %v178
    %v180 = vlaneseq
    %v181 = vshrl.u32 %v180, 7
    %v182 = vsub.s32 2, %v181
    %v183 = vrot.slane %v170, %v182
    %v184 = vlaneseq
    %v185 = vshrl.u32 %v184, 7
    %v186 = vsub.s32 3, %v185
    %v187 = vrot.slane %v170, %v186
    %v188 = vlaneseq
    %v189 = vshrl.u32 %v188, 7
    %v190 = vsub.s32 4, %v189
    %v191 = vrot.slane %v170, %v190
    %v192 = vlaneseq
    %v193 = vshrl.u32 %v192, 7
    %v194 = vsub.s32 5, %v193
    %v195 = vrot.slane %v170, %v194
    %v196 = vlaneseq
    %v197 = vshrl.u32 %v196, 7
    %v198 = vsub.s32 6, %v197
    %v199 = vrot.slane %v170, %v198
    %v208 = vsel %vm81, %v155, 0
    %210 = vmatprep.subr.mxu0 %v157
    %211 = vmatpush1.msra.mxu0 %v156
    %212 = vmatprep.subr.mxu0 %v164
    %213 = vmatpush1.msra.mxu0 %v163
    %214 = vmatprep.subr.mxu0 0.0
    %215 = vmatpush1.msra.mxu0 0.0
    %216 = vmatprep.subr.mxu0 0.0
    %217 = vmatpush1.msra.mxu0 0.0
    %218 = vmatprep.subr.mxu0 0.0
    %219 = vmatpush1.msra.mxu0 0.0
    %220 = vmatprep.subr.mxu0 0.0
    %221 = vmatpush1.msra.mxu0 0.0
    %222 = vmatprep.subr.mxu0 0.0
    %223 = vmatpush1.msra.mxu0 0.0
    %224 = vmatprep.subr.mxu0 0.0
    %225 = vmatpush1.msra.mxu0 0.0
    %226 = vmatprep.subr.mxu0 0.0
    %227 = vmatpush1.msra.mxu0 0.0
    %228 = vmatprep.subr.mxu0 0.0
    %229 = vmatpush1.msra.mxu0 0.0
    %230 = vmatprep.subr.mxu0 0.0
    %231 = vmatpush1.msra.mxu0 0.0
    %232 = vmatprep.subr.mxu0 0.0
    %233 = vmatpush1.msra.mxu0 0.0
    %234 = vmatprep.subr.mxu0 0.0
    %235 = vmatpush1.msra.mxu0 0.0
    %236 = vmatprep.subr.mxu0 0.0
    %237 = vmatpush1.msra.mxu0 0.0
    %238 = vmatprep.subr.mxu0 0.0
    %239 = vmatpush1.msra.mxu0 0.0
    %240 = vmatprep.subr.mxu0 0.0
    %241 = vmatpush1.msra.mxu0 0.0
    %242 = vmatprep.subr.mxu0 0.0
    %243 = vmatpush1.msra.mxu0 0.0
    %244 = vmatprep.subr.mxu0 0.0
    %245 = vmatpush1.msra.mxu0 0.0
    %246 = vmatprep.subr.mxu0 0.0
    %247 = vmatpush1.msra.mxu0 0.0
    %248 = vmatprep.subr.mxu0 0.0
    %249 = vmatpush1.msra.mxu0 0.0
    %250 = vmatprep.subr.mxu0 0.0
    %251 = vmatpush1.msra.mxu0 0.0
    %252 = vmatprep.subr.mxu0 0.0
    %253 = vmatpush1.msra.mxu0 0.0
    %254 = vmatprep.subr.mxu0 0.0
    %255 = vmatpush1.msra.mxu0 0.0
    %256 = vmatprep.subr.mxu0 0.0
    %257 = vmatpush1.msra.mxu0 0.0
    %258 = vmatprep.subr.mxu0 0.0
    %259 = vmatpush1.msra.mxu0 0.0
    %260 = vmatprep.subr.mxu0 0.0
    %261 = vmatpush1.msra.mxu0 0.0
    %262 = vmatprep.subr.mxu0 0.0
    %263 = vmatpush1.msra.mxu0 0.0
    %264 = vmatprep.subr.mxu0 0.0
    %265 = vmatpush1.msra.mxu0 0.0
    %266 = vmatprep.subr.mxu0 0.0
    %267 = vmatpush1.msra.mxu0 0.0
    %268 = vmatprep.subr.mxu0 0.0
    %269 = vmatpush1.msra.mxu0 0.0
    %270 = vmatprep.subr.mxu0 0.0
    %271 = vmatpush1.msra.mxu0 0.0
    %272 = vmatprep.subr.mxu0 0.0
    %273 = vmatpush1.msra.mxu0 0.0
    %274 = vmatprep.mubr.f32.mxu0 0.0
    %275 = vmatmul.mubr.f32.gmra.mrb[0].mxu0 %v208
    %v276 = vpop.f32.mrb[0].mxu0
    %v277 = vadd.f32 %v175, %v276
    %v278 = vpop.f32.mrb[0].mxu0
    %v279 = vadd.f32 %v179, %v278
    %280 = vdwg.mxu0
    %281 = vmatprep.subr.mxu0 %v159
    %282 = vmatpush1.msra.mxu0 %v158
    %283 = vmatprep.subr.mxu0 %v166
    %284 = vmatpush1.msra.mxu0 %v165
    %285 = vmatprep.subr.mxu0 0.0
    %286 = vmatpush1.msra.mxu0 0.0
    %287 = vmatprep.subr.mxu0 0.0
    %288 = vmatpush1.msra.mxu0 0.0
    %289 = vmatprep.subr.mxu0 0.0
    %290 = vmatpush1.msra.mxu0 0.0
    %291 = vmatprep.subr.mxu0 0.0
    %292 = vmatpush1.msra.mxu0 0.0
    %293 = vmatprep.subr.mxu0 0.0
    %294 = vmatpush1.msra.mxu0 0.0
    %295 = vmatprep.subr.mxu0 0.0
    %296 = vmatpush1.msra.mxu0 0.0
    %297 = vmatprep.subr.mxu0 0.0
    %298 = vmatpush1.msra.mxu0 0.0
    %299 = vmatprep.subr.mxu0 0.0
    %300 = vmatpush1.msra.mxu0 0.0
    %301 = vmatprep.subr.mxu0 0.0
    %302 = vmatpush1.msra.mxu0 0.0
    %303 = vmatprep.subr.mxu0 0.0
    %304 = vmatpush1.msra.mxu0 0.0
    %305 = vmatprep.subr.mxu0 0.0
    %306 = vmatpush1.msra.mxu0 0.0
    %307 = vmatprep.subr.mxu0 0.0
    %308 = vmatpush1.msra.mxu0 0.0
    %309 = vmatprep.subr.mxu0 0.0
    %310 = vmatpush1.msra.mxu0 0.0
    %311 = vmatprep.subr.mxu0 0.0
    %312 = vmatpush1.msra.mxu0 0.0
    %313 = vmatprep.subr.mxu0 0.0
    %314 = vmatpush1.msra.mxu0 0.0
    %315 = vmatprep.subr.mxu0 0.0
    %316 = vmatpush1.msra.mxu0 0.0
    %317 = vmatprep.subr.mxu0 0.0
    %318 = vmatpush1.msra.mxu0 0.0
    %319 = vmatprep.subr.mxu0 0.0
    %320 = vmatpush1.msra.mxu0 0.0
    %321 = vmatprep.subr.mxu0 0.0
    %322 = vmatpush1.msra.mxu0 0.0
    %323 = vmatprep.subr.mxu0 0.0
    %324 = vmatpush1.msra.mxu0 0.0
    %325 = vmatprep.subr.mxu0 0.0
    %326 = vmatpush1.msra.mxu0 0.0
    %327 = vmatprep.subr.mxu0 0.0
    %328 = vmatpush1.msra.mxu0 0.0
    %329 = vmatprep.subr.mxu0 0.0
    %330 = vmatpush1.msra.mxu0 0.0
    %331 = vmatprep.subr.mxu0 0.0
    %332 = vmatpush1.msra.mxu0 0.0
    %333 = vmatprep.subr.mxu0 0.0
    %334 = vmatpush1.msra.mxu0 0.0
    %335 = vmatprep.subr.mxu0 0.0
    %336 = vmatpush1.msra.mxu0 0.0
    %337 = vmatprep.subr.mxu0 0.0
    %338 = vmatpush1.msra.mxu0 0.0
    %339 = vmatprep.subr.mxu0 0.0
    %340 = vmatpush1.msra.mxu0 0.0
    %341 = vmatprep.subr.mxu0 0.0
    %342 = vmatpush1.msra.mxu0 0.0
    %343 = vmatprep.subr.mxu0 0.0
    %344 = vmatpush1.msra.mxu0 0.0
    %345 = vmatprep.mubr.f32.mxu0 0.0
    %346 = vmatmul.mubr.f32.gmra.mrb[0].mxu0 %v208
    %v347 = vpop.f32.mrb[0].mxu0
    %v348 = vadd.f32 %v183, %v347
    %v349 = vpop.f32.mrb[0].mxu0
    %v350 = vadd.f32 %v187, %v349
    %351 = vdwg.mxu0
    %352 = vmatprep.subr.mxu0 %v161
    %353 = vmatpush1.msra.mxu0 %v160
    %354 = vmatprep.subr.mxu0 %v168
    %355 = vmatpush1.msra.mxu0 %v167
    %356 = vmatprep.subr.mxu0 0.0
    %357 = vmatpush1.msra.mxu0 0.0
    %358 = vmatprep.subr.mxu0 0.0
    %359 = vmatpush1.msra.mxu0 0.0
    %360 = vmatprep.subr.mxu0 0.0
    %361 = vmatpush1.msra.mxu0 0.0
    %362 = vmatprep.subr.mxu0 0.0
    %363 = vmatpush1.msra.mxu0 0.0
    %364 = vmatprep.subr.mxu0 0.0
    %365 = vmatpush1.msra.mxu0 0.0
    %366 = vmatprep.subr.mxu0 0.0
    %367 = vmatpush1.msra.mxu0 0.0
    %368 = vmatprep.subr.mxu0 0.0
    %369 = vmatpush1.msra.mxu0 0.0
    %370 = vmatprep.subr.mxu0 0.0
    %371 = vmatpush1.msra.mxu0 0.0
    %372 = vmatprep.subr.mxu0 0.0
    %373 = vmatpush1.msra.mxu0 0.0
    %374 = vmatprep.subr.mxu0 0.0
    %375 = vmatpush1.msra.mxu0 0.0
    %376 = vmatprep.subr.mxu0 0.0
    %377 = vmatpush1.msra.mxu0 0.0
    %378 = vmatprep.subr.mxu0 0.0
    %379 = vmatpush1.msra.mxu0 0.0
    %380 = vmatprep.subr.mxu0 0.0
    %381 = vmatpush1.msra.mxu0 0.0
    %382 = vmatprep.subr.mxu0 0.0
    %383 = vmatpush1.msra.mxu0 0.0
    %384 = vmatprep.subr.mxu0 0.0
    %385 = vmatpush1.msra.mxu0 0.0
    %386 = vmatprep.subr.mxu0 0.0
    %387 = vmatpush1.msra.mxu0 0.0
    %388 = vmatprep.subr.mxu0 0.0
    %389 = vmatpush1.msra.mxu0 0.0
    %390 = vmatprep.subr.mxu0 0.0
    %391 = vmatpush1.msra.mxu0 0.0
    %392 = vmatprep.subr.mxu0 0.0
    %393 = vmatpush1.msra.mxu0 0.0
    %394 = vmatprep.subr.mxu0 0.0
    %395 = vmatpush1.msra.mxu0 0.0
    %396 = vmatprep.subr.mxu0 0.0
    %397 = vmatpush1.msra.mxu0 0.0
    %398 = vmatprep.subr.mxu0 0.0
    %399 = vmatpush1.msra.mxu0 0.0
    %400 = vmatprep.subr.mxu0 0.0
    %401 = vmatpush1.msra.mxu0 0.0
    %402 = vmatprep.subr.mxu0 0.0
    %403 = vmatpush1.msra.mxu0 0.0
    %404 = vmatprep.subr.mxu0 0.0
    %405 = vmatpush1.msra.mxu0 0.0
    %406 = vmatprep.subr.mxu0 0.0
    %407 = vmatpush1.msra.mxu0 0.0
    %408 = vmatprep.subr.mxu0 0.0
    %409 = vmatpush1.msra.mxu0 0.0
    %410 = vmatprep.subr.mxu0 0.0
    %411 = vmatpush1.msra.mxu0 0.0
    %412 = vmatprep.subr.mxu0 0.0
    %413 = vmatpush1.msra.mxu0 0.0
    %414 = vmatprep.subr.mxu0 0.0
    %415 = vmatpush1.msra.mxu0 0.0
    %416 = vmatprep.mubr.f32.mxu0 0.0
    %417 = vmatmul.mubr.f32.gmra.mrb[0].mxu0 %v208
    %v418 = vpop.f32.mrb[0].mxu0
    %v419 = vadd.f32 %v191, %v418
    %v420 = vpop.f32.mrb[0].mxu0
    %v421 = vadd.f32 %v195, %v420
    %422 = vdwg.mxu0
    %423 = vmatprep.subr.mxu0 0.0
    %424 = vmatpush1.msra.mxu0 %v162
    %425 = vmatprep.subr.mxu0 0.0
    %426 = vmatpush1.msra.mxu0 %v169
    %427 = vmatprep.subr.mxu0 0.0
    %428 = vmatpush1.msra.mxu0 0.0
    %429 = vmatprep.subr.mxu0 0.0
    %430 = vmatpush1.msra.mxu0 0.0
    %431 = vmatprep.subr.mxu0 0.0
    %432 = vmatpush1.msra.mxu0 0.0
    %433 = vmatprep.subr.mxu0 0.0
    %434 = vmatpush1.msra.mxu0 0.0
    %435 = vmatprep.subr.mxu0 0.0
    %436 = vmatpush1.msra.mxu0 0.0
    %437 = vmatprep.subr.mxu0 0.0
    %438 = vmatpush1.msra.mxu0 0.0
    %439 = vmatprep.subr.mxu0 0.0
    %440 = vmatpush1.msra.mxu0 0.0
    %441 = vmatprep.subr.mxu0 0.0
    %442 = vmatpush1.msra.mxu0 0.0
    %443 = vmatprep.subr.mxu0 0.0
    %444 = vmatpush1.msra.mxu0 0.0
    %445 = vmatprep.subr.mxu0 0.0
    %446 = vmatpush1.msra.mxu0 0.0
    %447 = vmatprep.subr.mxu0 0.0
    %448 = vmatpush1.msra.mxu0 0.0
    %449 = vmatprep.subr.mxu0 0.0
    %450 = vmatpush1.msra.mxu0 0.0
    %451 = vmatprep.subr.mxu0 0.0
    %452 = vmatpush1.msra.mxu0 0.0
    %453 = vmatprep.subr.mxu0 0.0
    %454 = vmatpush1.msra.mxu0 0.0
    %455 = vmatprep.subr.mxu0 0.0
    %456 = vmatpush1.msra.mxu0 0.0
    %457 = vmatprep.subr.mxu0 0.0
    %458 = vmatpush1.msra.mxu0 0.0
    %459 = vmatprep.subr.mxu0 0.0
    %460 = vmatpush1.msra.mxu0 0.0
    %461 = vmatprep.subr.mxu0 0.0
    %462 = vmatpush1.msra.mxu0 0.0
    %463 = vmatprep.subr.mxu0 0.0
    %464 = vmatpush1.msra.mxu0 0.0
    %465 = vmatprep.subr.mxu0 0.0
    %466 = vmatpush1.msra.mxu0 0.0
    %467 = vmatprep.subr.mxu0 0.0
    %468 = vmatpush1.msra.mxu0 0.0
    %469 = vmatprep.subr.mxu0 0.0
    %470 = vmatpush1.msra.mxu0 0.0
    %471 = vmatprep.subr.mxu0 0.0
    %472 = vmatpush1.msra.mxu0 0.0
    %473 = vmatprep.subr.mxu0 0.0
    %474 = vmatpush1.msra.mxu0 0.0
    %475 = vmatprep.subr.mxu0 0.0
    %476 = vmatpush1.msra.mxu0 0.0
    %477 = vmatprep.subr.mxu0 0.0
    %478 = vmatpush1.msra.mxu0 0.0
    %479 = vmatprep.subr.mxu0 0.0
    %480 = vmatpush1.msra.mxu0 0.0
    %481 = vmatprep.subr.mxu0 0.0
    %482 = vmatpush1.msra.mxu0 0.0
    %483 = vmatprep.subr.mxu0 0.0
    %484 = vmatpush1.msra.mxu0 0.0
    %485 = vmatprep.subr.mxu0 0.0
    %486 = vmatpush1.msra.mxu0 0.0
    %487 = vmatprep.mubr.f32.mxu0 0.0
    %488 = vmatmul.mubr.f32.gmra.mrb[0].mxu0 %v208
    %v489 = vpop.f32.mrb[0].mxu0
    %v490 = vadd.f32 %v199, %v489
    %v491 = vpop.f32.mrb[0].mxu0
    %492 = vdwg.mxu0
    %v499 = vcombine.low %v277, %v279
    %v500 = vcombine.low %v348, %v350
    %v501 = vcombine.low %v419, %v421
    %505 = vst [vmem:[%s5] sm:$0xff] %v499
    %506 = vst [vmem:[%s5 + $0x8] sm:$0xff] %v500
    %507 = vst [vmem:[%s5 + $0x10] sm:$0xff] %v501
    %508 = vst [vmem:[%s5 + $0x18] sm:$0xf] %v490
    // Predicated region
    $region38: #{atom_mlp.1} parent=1 // pred_check
      _
    $region39: #{atom_mlp.1} parent=1 // pred_check_branch
      %510 = sbr.rel (0) target = $region41
    $region40: #{atom_mlp.1} parent=1 // pred_region
      _
    $region41: #{atom_mlp.1} parent=1 // pred_fallthru
      _
    // Predicated region
    $region42: #{atom_mlp.1} parent=1 // pred_check
      _
    $region43: #{atom_mlp.1} parent=1 // pred_check_branch
      %512 = sbr.rel (0) target = $region45
    $region44: #{atom_mlp.1} parent=1 // pred_region
      _
    $region45: #{atom_mlp.1} parent=1 // pred_fallthru
      _
    %513 = vsyncpa [#allocation3], 1
    %514 = vsyncpa [#allocation5], 1
    %515 = vsyncpa [#allocation8], 1

</llo_original>
